<compile_context>
chip_gen: v5e
topology: v5e:2x2
jax: 0.10.0
libtpu: 0.0.40
codegen_flags: <defaults>
</compile_context>

<pallas_src>
import jax
import jax.numpy as jnp
from jax.experimental import pallas as pl
from jax.experimental.pallas import tpu as pltpu


def _round_up(x, m):
    return ((x + m - 1) // m) * m


def _cdiv(a, b):
    return -(-a // b)


def _vmem_capacity_bytes():
    try:
        return int(pltpu.get_tpu_info().vmem_capacity_bytes)
    except Exception:
        return 64 * 1024 * 1024  # conservative fallback (v7x per-core VMEM)


def _per_row_vmem_bytes(D, H, x_bytes, out_bytes, cd_bytes):
    """Live VMEM bytes per batch row in one grid step (pipelined buffers + temporaries)."""
    return (2 * D * x_bytes        # x row tile, double-buffered input
            + 2 * D * out_bytes    # out row tile, double-buffered output
            + D * cd_bytes         # xc: compute-dtype copy of x
            + H * 4                # fc1 f32 accumulation + bias + ReLU
            + H * cd_bytes         # h cast to compute dtype
            + 2 * D * 4)           # fc2 f32 result + residual add


def _pick_tm(B, D, H, x_bytes, out_bytes, cd_bytes, weight_bytes, vmem_cap):
    """Row-tile size: as large as fits the per-generation VMEM budget (capacity minus the
    single-buffered resident weights minus scratch headroom), multiple of 8, not inflating
    tiny batches, preferring an even grid-step count for v7x's two TensorCores."""
    headroom = 8 * 1024 * 1024
    budget = max(vmem_cap - weight_bytes - headroom, 4 * 1024 * 1024)
    per_row = _per_row_vmem_bytes(D, H, x_bytes, out_bytes, cd_bytes)
    tm = 1024
    while tm > 8 and tm * per_row > budget:
        tm //= 2
    tm = max(8, tm)
    if tm >= B:
        return B                           # single full-batch tile: no row padding at all
    steps = _cdiv(B, tm)
    if steps > 1 and steps % 2 == 1:
        # Shrink the tile so the (parallel) batch axis splits evenly across 2 TensorCores.
        tm_even = max(8, _round_up(_cdiv(B, steps + 1), 8))
        if _cdiv(B, tm_even) % 2 == 0:
            tm = tm_even
    return tm


def _residual_block_kernel(x_ref, w1_ref, b1_ref, w2_ref, b2_ref, o_ref):
    x = x_ref[...]                                     # (tm, D), input dtype
    xc = x.astype(w1_ref.dtype)                        # bf16 operands by default
    # fc1 -> (dropout: identity) -> relu   (f32 accumulation, f32 bias/ReLU)
    h = jnp.dot(xc, w1_ref[...], preferred_element_type=jnp.float32) + b1_ref[...]
    h = jnp.maximum(h, 0.0).astype(w2_ref.dtype)       # cast once: half-size intermediate
    # fc2 -> (dropout: identity) -> relu
    x2 = jnp.dot(h, w2_ref[...], preferred_element_type=jnp.float32) + b2_ref[...]
    x2 = jnp.maximum(x2, 0.0)                          # (tm, D), f32
    # residual add in f32
    o_ref[...] = (x.astype(jnp.float32) + x2).astype(o_ref.dtype)


def make_residual_block(w1, b1, w2, b2, *, compute_dtype=jnp.bfloat16, tm=None):
    """One-time parameter setup (casting hoisted out of the per-call path).

    w1: (init_dim, inner_dim); b1: (inner_dim,) or (1, inner_dim);
    w2: (inner_dim, init_dim); b2: (init_dim,) or (1, init_dim).
    (Weights are already transposed w.r.t. PyTorch's nn.Linear layout.)
    Returns a jitted callable: x (B, init_dim) -> (B, init_dim)."""
    D, H = w1.shape
    assert w2.shape == (H, D), f"w2 must be ({H}, {D}), got {w2.shape}"
    wd = jnp.dtype(compute_dtype)

    w1c = jnp.asarray(w1, wd)
    w2c = jnp.asarray(w2, wd)
    b1c = jnp.asarray(b1, jnp.float32).reshape(1, H)
    b2c = jnp.asarray(b2, jnp.float32).reshape(1, D)

    weight_bytes = (w1c.size + w2c.size) * wd.itemsize + (b1c.size + b2c.size) * 4
    vmem_cap = _vmem_capacity_bytes()
    cd_bytes = wd.itemsize

    full_vmem = pl.BlockSpec(memory_space=pltpu.MemorySpace.VMEM)  # resident, single buffer

    def apply(x):
        B, Dx = x.shape
        assert Dx == D, f"expected last dim {D}, got {Dx}"
        x_bytes = x.dtype.itemsize
        out_bytes = x.dtype.itemsize

        min_tile = 8 * _per_row_vmem_bytes(D, H, x_bytes, out_bytes, cd_bytes)
        if weight_bytes + min_tile + 8 * 1024 * 1024 > vmem_cap:
            # TODO(synk): K/N-blocked weight pipeline (extra grid axis + f32 accumulator
            # scratch + pl.when init/finalize) for layers too large for resident weights.
            raise ValueError(
                f"ResidualBlock weights ({weight_bytes / 2**20:.1f} MiB as {wd}) do not "
                f"fit VMEM-resident on this TPU ({vmem_cap / 2**20:.0f} MiB VMEM).")

        tile = tm if tm is not None else _pick_tm(
            B, D, H, x_bytes, out_bytes, cd_bytes, weight_bytes, vmem_cap)
        tile = int(tile)
        tile = B if tile >= B else max(8, (tile // 8) * 8)

        steps = _cdiv(B, tile)
        Bp = steps * tile

        # Only batch rows are (maybe) padded; feature dims stay unpadded -> no extra HBM
        # traffic for small init_dim and no padding at all for aligned shapes.
        xp = x if Bp == B else jnp.zeros((Bp, D), x.dtype).at[:B, :].set(x)

        tile_bytes = tile * _per_row_vmem_bytes(D, H, x_bytes, out_bytes, cd_bytes)
        needed = weight_bytes + tile_bytes + 4 * 1024 * 1024
        vmem_limit = int(min(max(needed, 32 * 1024 * 1024), vmem_cap - 4 * 1024 * 1024))
        vmem_limit = max(vmem_limit, 16 * 1024 * 1024)

        cost = pl.CostEstimate(
            flops=4 * Bp * D * H,                      # two matmuls, 2*B*D*H flops each
            transcendentals=0,
            bytes_accessed=int(Bp * D * (x_bytes + out_bytes) + weight_bytes),
        )

        out = pl.pallas_call(
            _residual_block_kernel,
            out_shape=jax.ShapeDtypeStruct((Bp, D), x.dtype),
            grid_spec=pltpu.PrefetchScalarGridSpec(
                num_scalar_prefetch=0,
                grid=(steps,),
                in_specs=[
                    pl.BlockSpec((tile, D), lambda i: (i, 0)),  # x row tile (pipelined)
                    full_vmem,                                  # W1 (resident)
                    full_vmem,                                  # b1 (resident)
                    full_vmem,                                  # W2 (resident)
                    full_vmem,                                  # b2 (resident)
                ],
                out_specs=pl.BlockSpec((tile, D), lambda i: (i, 0)),
            ),
            compiler_params=pltpu.CompilerParams(
                dimension_semantics=("parallel",),
                vmem_limit_bytes=vmem_limit,
            ),
            cost_estimate=cost,
        )(xp, w1c, b1c, w2c, b2c)

        return out if Bp == B else out[:B, :]

    return jax.jit(apply)


def residual_block(x, w1, b1, w2, b2, *, compute_dtype=jnp.bfloat16, tm=None):
    """One-shot convenience wrapper (prefer make_residual_block for repeated calls)."""
    return make_residual_block(w1, b1, w2, b2, compute_dtype=compute_dtype, tm=tm)(x)


def reference(x, w1, b1, w2, b2):
    h = jnp.maximum(x @ w1 + b1, 0.0)
    x2 = jnp.maximum(h @ w2 + b2, 0.0)
    return x + x2


if __name__ == "__main__":
    B, init_dim, inner_dim = 16, 32, 64

    key = jax.random.PRNGKey(0)
    kx, kw1, kb1, kw2, kb2 = jax.random.split(key, 5)

    x = jax.random.normal(kx, (B, init_dim), dtype=jnp.float32)
    # Deterministic init mimicking nn.Linear's uniform(-1/sqrt(fan_in), 1/sqrt(fan_in)).
    s1 = 1.0 / (init_dim ** 0.5)
    s2 = 1.0 / (inner_dim ** 0.5)
    w1 = jax.random.uniform(kw1, (init_dim, inner_dim), jnp.float32, -s1, s1)
    b1 = jax.random.uniform(kb1, (inner_dim,), jnp.float32, -s1, s1)
    w2 = jax.random.uniform(kw2, (inner_dim, init_dim), jnp.float32, -s2, s2)
    b2 = jax.random.uniform(kb2, (init_dim,), jnp.float32, -s2, s2)

    ref = reference(x, w1, b1, w2, b2)

    # Default path: bf16 matmul operands, f32 accumulation, single full-batch tile,
    # no padding or slicing anywhere (params cast once in make_residual_block).
    block_bf16 = make_residual_block(w1, b1, w2, b2)
    out_bf16 = jax.block_until_ready(block_bf16(x))
    assert out_bf16.shape == (B, init_dim)
    assert jnp.all(jnp.isfinite(out_bf16)), "NaN/Inf in bf16 kernel output"
    assert jnp.allclose(out_bf16, ref, atol=5e-2, rtol=5e-2), "bf16 mismatch vs. reference"

    # f32 operands, tight tolerance.
    block_f32 = make_residual_block(w1, b1, w2, b2, compute_dtype=jnp.float32)
    out_f32 = jax.block_until_ready(block_f32(x))
    assert jnp.all(jnp.isfinite(out_f32)), "NaN/Inf in f32 kernel output"
    assert jnp.allclose(out_f32, ref, atol=1e-4, rtol=1e-4), "f32 mismatch vs. reference"

    # Multi-step grid with batch-row padding (B=20, tm=8 -> 3 steps, 4 padded rows sliced off).
    x20 = jax.random.normal(kx, (20, init_dim), dtype=jnp.float32)
    ref20 = reference(x20, w1, b1, w2, b2)
    block_tiled = make_residual_block(w1, b1, w2, b2, compute_dtype=jnp.float32, tm=8)
    out20 = jax.block_until_ready(block_tiled(x20))
    assert out20.shape == (20, init_dim)
    assert jnp.allclose(out20, ref20, atol=1e-4, rtol=1e-4), "tiled mismatch vs. reference"

    print("KERNEL_OK")
</pallas_src>

<mosaic_0001>
module attributes {stable_mosaic.version = 11 : i64} {
  func.func @_residual_block_kernel(%arg0: i32, %arg1: memref<16x32xf32, #tpu.memory_space<vmem>>, %arg2: memref<32x64xbf16, #tpu.memory_space<vmem>>, %arg3: memref<1x64xf32, #tpu.memory_space<vmem>>, %arg4: memref<64x32xbf16, #tpu.memory_space<vmem>>, %arg5: memref<1x32xf32, #tpu.memory_space<vmem>>, %arg6: memref<16x32xf32, #tpu.memory_space<vmem>>) attributes {dimension_semantics = [#tpu.dimension_semantics<parallel>], iteration_bounds = array<i64: 1>, scalar_prefetch = 0 : i64, scratch_operands = 0 : i64, tpu.core_type = #tpu.core_type<tc>, window_params = [{transform_indices = @transform_0, window_bounds = array<i64: 16, 32>}, {pipeline_mode = #tpu.pipeline_mode<synchronous>, transform_indices = @transform_1, window_bounds = array<i64: 32, 64>}, {pipeline_mode = #tpu.pipeline_mode<synchronous>, transform_indices = @transform_2, window_bounds = array<i64: 1, 64>}, {pipeline_mode = #tpu.pipeline_mode<synchronous>, transform_indices = @transform_3, window_bounds = array<i64: 64, 32>}, {pipeline_mode = #tpu.pipeline_mode<synchronous>, transform_indices = @transform_4, window_bounds = array<i64: 1, 32>}, {transform_indices = @transform_5, window_bounds = array<i64: 16, 32>}]} {
    %c0 = arith.constant 0 : index
    %c0_0 = arith.constant 0 : index
    %0 = vector.load %arg1[%c0, %c0_0] : memref<16x32xf32, #tpu.memory_space<vmem>>, vector<16x32xf32>
    %1 = arith.truncf %0 : vector<16x32xf32> to vector<16x32xbf16>
    %c0_1 = arith.constant 0 : index
    %c0_2 = arith.constant 0 : index
    %2 = vector.load %arg2[%c0_1, %c0_2] : memref<32x64xbf16, #tpu.memory_space<vmem>>, vector<32x64xbf16>
    %cst = arith.constant dense<0.000000e+00> : vector<16x64xf32>
    %3 = tpu.matmul %1, %2, %cst {dimension_numbers = #tpu.dot_dimension_numbers<[1], [0], [0], [1], [0, 0, 1, 1], [], []>} : vector<16x32xbf16>, vector<32x64xbf16>, vector<16x64xf32> -> vector<16x64xf32>
    %c0_3 = arith.constant 0 : index
    %c0_4 = arith.constant 0 : index
    %4 = vector.load %arg3[%c0_3, %c0_4] : memref<1x64xf32, #tpu.memory_space<vmem>>, vector<1x64xf32>
    %5 = vector.broadcast %4 : vector<1x64xf32> to vector<16x64xf32>
    %6 = arith.addf %3, %5 : vector<16x64xf32>
    %cst_5 = arith.constant 0.000000e+00 : f32
    %7 = vector.broadcast %cst_5 : f32 to vector<16x64xf32>
    %8 = arith.maximumf %6, %7 : vector<16x64xf32>
    %9 = arith.truncf %8 : vector<16x64xf32> to vector<16x64xbf16>
    %c0_6 = arith.constant 0 : index
    %c0_7 = arith.constant 0 : index
    %10 = vector.load %arg4[%c0_6, %c0_7] : memref<64x32xbf16, #tpu.memory_space<vmem>>, vector<64x32xbf16>
    %cst_8 = arith.constant dense<0.000000e+00> : vector<16x32xf32>
    %11 = tpu.matmul %9, %10, %cst_8 {dimension_numbers = #tpu.dot_dimension_numbers<[1], [0], [0], [1], [0, 0, 1, 1], [], []>} : vector<16x64xbf16>, vector<64x32xbf16>, vector<16x32xf32> -> vector<16x32xf32>
    %c0_9 = arith.constant 0 : index
    %c0_10 = arith.constant 0 : index
    %12 = vector.load %arg5[%c0_9, %c0_10] : memref<1x32xf32, #tpu.memory_space<vmem>>, vector<1x32xf32>
    %13 = vector.broadcast %12 : vector<1x32xf32> to vector<16x32xf32>
    %14 = arith.addf %11, %13 : vector<16x32xf32>
    %cst_11 = arith.constant 0.000000e+00 : f32
    %15 = vector.broadcast %cst_11 : f32 to vector<16x32xf32>
    %16 = arith.maximumf %14, %15 : vector<16x32xf32>
    %17 = arith.addf %0, %16 : vector<16x32xf32>
    %c0_12 = arith.constant 0 : index
    %c0_13 = arith.constant 0 : index
    %18 = vector.load %arg6[%c0_12, %c0_13] : memref<16x32xf32, #tpu.memory_space<vmem>>, vector<16x32xf32>
    tpu.vector_store %arg6[%c0_12, %c0_13], %17 {strides = array<i32>} : memref<16x32xf32, #tpu.memory_space<vmem>>, vector<16x32xf32>,
    return
  }
  func.func @transform_0(%arg0: i32) -> (i32, i32) {
    %c0_i32 = arith.constant 0 : i32
    %c0_i32_0 = arith.constant 0 : i32
    return %arg0, %c0_i32 : i32, i32
  }
  func.func @transform_1(%arg0: i32) -> (i32, i32) {
    %c0_i32 = arith.constant 0 : i32
    %c0_i32_0 = arith.constant 0 : i32
    %c0_i32_1 = arith.constant 0 : i32
    return %c0_i32, %c0_i32_0 : i32, i32
  }
  func.func @transform_2(%arg0: i32) -> (i32, i32) {
    %c0_i32 = arith.constant 0 : i32
    %c0_i32_0 = arith.constant 0 : i32
    %c0_i32_1 = arith.constant 0 : i32
    return %c0_i32, %c0_i32_0 : i32, i32
  }
  func.func @transform_3(%arg0: i32) -> (i32, i32) {
    %c0_i32 = arith.constant 0 : i32
    %c0_i32_0 = arith.constant 0 : i32
    %c0_i32_1 = arith.constant 0 : i32
    return %c0_i32, %c0_i32_0 : i32, i32
  }
  func.func @transform_4(%arg0: i32) -> (i32, i32) {
    %c0_i32 = arith.constant 0 : i32
    %c0_i32_0 = arith.constant 0 : i32
    %c0_i32_1 = arith.constant 0 : i32
    return %c0_i32, %c0_i32_0 : i32, i32
  }
  func.func @transform_5(%arg0: i32) -> (i32, i32) {
    %c0_i32 = arith.constant 0 : i32
    %c0_i32_0 = arith.constant 0 : i32
    return %arg0, %c0_i32 : i32, i32
  }
}

</mosaic_0001>

<llo_original>
// kernel: apply.1
$region0: #{apply.1}
  #allocation0 [shape = 'u32[]', space=smem, size = 0x4, offset = 0x4, fixed_abs, tag = 'smem constant byte address 0x4 - core index']
  #allocation1 [shape = 'u32[72,128]{1,0:T(1,128)}', space=vmem, size = 0x9000, scoped, tag = 'internal scratch']
  %s0 = inlined_call_operand.hbm [shape: f32[16,32], index: 0, kind: input, shape index: {}]
  %s1 = inlined_call_operand.hbm [shape: bf16[32,64], index: 1, kind: input, shape index: {}]
  %s2 = inlined_call_operand.hbm [shape: f32[1,64], index: 2, kind: input, shape index: {}]
  %s3 = inlined_call_operand.hbm [shape: bf16[64,32], index: 3, kind: input, shape index: {}]
  %s4 = inlined_call_operand.vmem [shape: f32[1,32], index: 4, kind: input, shape index: {}]
  %s5 = inlined_call_operand.hbm [shape: f32[16,32], index: 5, kind: output, shape index: {}]
  %s6 = sld [smem:[#allocation0]]
  $region46: #{apply.1} parent=0
    _
  %s8 = ssub.s32 1, %s6
  %s9 = scalar_select 0, %s8, %s6
  $region1: #{apply.1} parent=0
    #allocation2 [shape = 'u8[8192]{0}', space=vmem, size = 0x2000, scoped, tag = 'input window, operand 0, single buffered']
    #allocation3 [shape = 's32[1]{0}', space=sflag, size = 0x4, scoped, tag = 'scoped memory for apply.1']
    #allocation4 [shape = 's32[1]{0}', space=sflag, size = 0x4, scoped, tag = 'scoped memory for apply.1']
    #allocation5 [shape = 'u8[8192]{0}', space=vmem, size = 0x2000, scoped, tag = 'input window, operand 1, single buffered']
    #allocation6 [shape = 's32[1]{0}', space=sflag, size = 0x4, scoped, tag = 'scoped memory for apply.1']
    #allocation7 [shape = 'u8[512]{0}', space=vmem, size = 0x400, scoped, tag = 'input window, operand 2, single buffered']
    #allocation8 [shape = 'u8[16384]{0}', space=vmem, size = 0x4000, scoped, tag = 'input window, operand 3, single buffered']
    #allocation9 [shape = 's32[1]{0}', space=sflag, size = 0x4, scoped, tag = 'scoped memory for apply.1']
    #allocation10 [shape = 'u8[8192]{0}', space=vmem, size = 0x2000, scoped, tag = 'output window, operand 0, single buffered']
    %10 = vsyncpa [#allocation3], 0
    %11 = vsyncpa [#allocation6], 0
    %12 = vsyncpa [#allocation9], 0
    %13 = vsyncpa [#allocation4], 0
    // Predicated region
    $region2: #{apply.1} parent=1 // pred_check
      _
    $region3: #{apply.1} parent=1 // pred_check_branch
      %15 = sbr.rel (0) target = $region5
    $region4: #{apply.1} parent=1 // pred_region
      %17 = vsyncadd [#allocation3], 0
      %s18 = sshll.u32 %s0, 4
      %s19 = int_to_ptr.hbm [resolvable:$true] %s18
      %s20 = sshll.u32 [#allocation2], 4
      %s21 = int_to_ptr.vmem [resolvable:$true] %s20
      %26 = dma.hbm_to_vmem [thread:$0]  %s19, 256, %s21, [#allocation3], 128, 128, 8
    $region5: #{apply.1} parent=1 // pred_fallthru
      _
    // Predicated region
    $region6: #{apply.1} parent=1 // pred_check
      _
    $region7: #{apply.1} parent=1 // pred_check_branch
      %28 = sbr.rel (0) target = $region9
    $region8: #{apply.1} parent=1 // pred_region
      %30 = vsyncadd [#allocation6], 0
      %s31 = sshll.u32 %s1, 4
      %s32 = int_to_ptr.hbm [resolvable:$true] %s31
      %s33 = sshll.u32 [#allocation5], 4
      %s34 = int_to_ptr.vmem [resolvable:$true] %s33
      %39 = dma.hbm_to_vmem [thread:$0]  %s32, 256, %s34, [#allocation6], 64, 64, 4
    $region9: #{apply.1} parent=1 // pred_fallthru
      _
    // Predicated region
    $region10: #{apply.1} parent=1 // pred_check
      _
    $region11: #{apply.1} parent=1 // pred_check_branch
      %41 = sbr.rel (0) target = $region13
    $region12: #{apply.1} parent=1 // pred_region
      %43 = vsyncadd [#allocation6], 0
      %s45 = sshll.u32 %s2, 4
      %s46 = int_to_ptr.hbm [resolvable:$true] %s45
      %s47 = sshll.u32 [#allocation7], 4
      %s48 = int_to_ptr.vmem [resolvable:$true] %s47
      %50 = dma.hbm_to_vmem [thread:$0]  %s46, 16, %s48, [#allocation6]
    $region13: #{apply.1} parent=1 // pred_fallthru
      _
    // Predicated region
    $region14: #{apply.1} parent=1 // pred_check
      _
    $region15: #{apply.1} parent=1 // pred_check_branch
      %52 = sbr.rel (0) target = $region17
    $region16: #{apply.1} parent=1 // pred_region
      %54 = vsyncadd [#allocation9], 0
      %s55 = sshll.u32 %s3, 4
      %s56 = int_to_ptr.hbm [resolvable:$true] %s55
      %s57 = sshll.u32 [#allocation8], 4
      %s58 = int_to_ptr.vmem [resolvable:$true] %s57
      %63 = dma.hbm_to_vmem [thread:$0]  %s56, 512, %s58, [#allocation9], 64, 64, 4
    $region17: #{apply.1} parent=1 // pred_fallthru
      _
    // Predicated region
    $region18: #{apply.1} parent=1 // pred_check
      _
    $region19: #{apply.1} parent=1 // pred_check_branch
      %65 = sbr.rel (0) target = $region21
    $region20: #{apply.1} parent=1 // pred_region
      _
    $region21: #{apply.1} parent=1 // pred_fallthru
      _
    // Predicated region
    $region22: #{apply.1} parent=1 // pred_check
      _
    $region23: #{apply.1} parent=1 // pred_check_branch
      %67 = sbr.rel (0) target = $region25
    $region24: #{apply.1} parent=1 // pred_region
      %69 = dma.done [#allocation3], 256
    $region25: #{apply.1} parent=1 // pred_fallthru
      _
    // Predicated region
    $region26: #{apply.1} parent=1 // pred_check
      _
    $region27: #{apply.1} parent=1 // pred_check_branch
      %71 = sbr.rel (0) target = $region29
    $region28: #{apply.1} parent=1 // pred_region
      %73 = dma.done [#allocation6], 256
    $region29: #{apply.1} parent=1 // pred_fallthru
      _
    // Predicated region
    $region30: #{apply.1} parent=1 // pred_check
      _
    $region31: #{apply.1} parent=1 // pred_check_branch
      %75 = sbr.rel (0) target = $region33
    $region32: #{apply.1} parent=1 // pred_region
      %77 = dma.done [#allocation6], 16
    $region33: #{apply.1} parent=1 // pred_fallthru
      _
    // Predicated region
    $region34: #{apply.1} parent=1 // pred_check
      _
    $region35: #{apply.1} parent=1 // pred_check_branch
      %79 = sbr.rel (0) target = $region37
    $region36: #{apply.1} parent=1 // pred_region
      %81 = dma.done [#allocation9], 512
    $region37: #{apply.1} parent=1 // pred_fallthru
      _
    %v83 = vld [vmem:[#allocation2] sm:$0xff]
    %v84 = vld [vmem:[#allocation2 + $0x8] sm:$0xff]
    %v85 = vpack.c.bf16 %v84, %v83
    %v86 = vld [vmem:[#allocation5] sm:$0xf]
    %v87 = vld [vmem:[#allocation5 + $0x4] sm:$0xf]
    %v88 = vld [vmem:[#allocation5 + $0x8] sm:$0xf]
    %v89 = vld [vmem:[#allocation5 + $0xc] sm:$0xf]
    %v90 = vld [vmem:[#allocation7] sm:$0x1]
    %v92 = vperm.slane %v90, 0
    %v98 = vunpack.c.l.b16 %v86
    %v99 = vunpack.c.l.b16 %v87
    %v100 = vunpack.c.l.b16 %v88
    %v101 = vunpack.c.l.b16 %v89
    %v102 = vpack.c.b16 %v99, %v98
    %v103 = vpack.c.b16 %v101, %v100
    %vm106 = vcmask 261120
    %v108 = vsel %vm106, %v85, 0
    %110 = vmatpush.bf16.msra.mxu0 0
    %111 = vmatpush.bf16.msra.mxu0 0
    %112 = vmatpush.bf16.msra.mxu0 0
    %113 = vmatpush.bf16.msra.mxu0 0
    %114 = vmatpush.bf16.msra.mxu0 0
    %115 = vmatpush.bf16.msra.mxu0 0
    %116 = vmatpush.bf16.msra.mxu0 %v103
    %117 = vmatpush.bf16.msra.mxu0 %v102
    %118 = vmatmul.bf16.gmra.mxu0 %v108
    %v119 = vpop.f32.mrf.mxu0
    %v120 = vadd.f32 %v92, %v119
    %v121 = vpop.f32.mrf.mxu0
    %v122 = vadd.f32 %v92, %v121
    %123 = vdwg.mxu0
    %v124 = vmax.f32 %v120, 0.0
    %v125 = vmax.f32 %v122, 0.0
    %v126 = vpack.c.bf16 %v125, %v124
    %v127 = vld [vmem:[#allocation8] sm:$0xf]
    %v128 = vld [vmem:[#allocation8 + $0x4] sm:$0xf]
    %v129 = vld [vmem:[#allocation8 + $0x8] sm:$0xf]
    %v130 = vld [vmem:[#allocation8 + $0xc] sm:$0xf]
    %v131 = vld [vmem:[#allocation8 + $0x10] sm:$0xf]
    %v132 = vld [vmem:[#allocation8 + $0x14] sm:$0xf]
    %v133 = vld [vmem:[#allocation8 + $0x18] sm:$0xf]
    %v134 = vld [vmem:[#allocation8 + $0x1c] sm:$0xf]
    %v135 = vld [vmem:[%s4] sm:$0x1]
    %v137 = vperm.slane %v135, 0
    %v147 = vunpack.c.l.b16 %v127
    %v148 = vunpack.c.l.b16 %v128
    %v149 = vunpack.c.l.b16 %v129
    %v150 = vunpack.c.l.b16 %v130
    %v151 = vunpack.c.l.b16 %v131
    %v152 = vunpack.c.l.b16 %v132
    %v153 = vunpack.c.l.b16 %v133
    %v154 = vunpack.c.l.b16 %v134
    %v155 = vpack.c.b16 %v148, %v147
    %v156 = vpack.c.b16 %v150, %v149
    %v157 = vpack.c.b16 %v152, %v151
    %v158 = vpack.c.b16 %v154, %v153
    %vm163 = vcmask 523264
    %v165 = vsel %vm163, %v126, 0
    %167 = vmatpush.bf16.msra.mxu0 0
    %168 = vmatpush.bf16.msra.mxu0 0
    %169 = vmatpush.bf16.msra.mxu0 0
    %170 = vmatpush.bf16.msra.mxu0 0
    %171 = vmatpush.bf16.msra.mxu0 %v158
    %172 = vmatpush.bf16.msra.mxu0 %v157
    %173 = vmatpush.bf16.msra.mxu0 %v156
    %174 = vmatpush.bf16.msra.mxu0 %v155
    %175 = vmatmul.bf16.gmra.mxu0 %v165
    %v176 = vpop.f32.mrf.mxu0
    %v177 = vadd.f32 %v137, %v176
    %v178 = vpop.f32.mrf.mxu0
    %v179 = vadd.f32 %v137, %v178
    %180 = vdwg.mxu0
    %v181 = vmax.f32 %v177, 0.0
    %v182 = vmax.f32 %v179, 0.0
    %v183 = vadd.f32 %v83, %v181
    %v184 = vadd.f32 %v84, %v182
    %185 = vst.msk [vmem:[#allocation10] sm:$0xff] %vm106, %v183
    %186 = vst.msk [vmem:[#allocation10 + $0x8] sm:$0xff] %vm106, %v184
    // Predicated region
    $region38: #{apply.1} parent=1 // pred_check
      _
    $region39: #{apply.1} parent=1 // pred_check_branch
      %188 = sbr.rel (0) target = $region41
    $region40: #{apply.1} parent=1 // pred_region
      %190 = vsyncadd [#allocation4], 0
      %s191 = sshll.u32 [#allocation10], 4
      %s192 = int_to_ptr.vmem [resolvable:$true] %s191
      %s193 = sshll.u32 %s5, 4
      %s194 = int_to_ptr.hbm [resolvable:$true] %s193
      %199 = dma.vmem_to_hbm [thread:$0]  %s192, 256, %s194, [#allocation4], 128, 128, 8
    $region41: #{apply.1} parent=1 // pred_fallthru
      _
    // Predicated region
    $region42: #{apply.1} parent=1 // pred_check
      _
    $region43: #{apply.1} parent=1 // pred_check_branch
      %201 = sbr.rel (0) target = $region45
    $region44: #{apply.1} parent=1 // pred_region
      %203 = dma.done [#allocation4], 256
    $region45: #{apply.1} parent=1 // pred_fallthru
      _
    %204 = vsyncpa [#allocation3], 1
    %205 = vsyncpa [#allocation6], 1
    %206 = vsyncpa [#allocation9], 1
    %207 = vsyncpa [#allocation4], 1

</llo_original>
